<compile_context>
chip_gen: v6e
topology: v6e:2x2x1
jax: 0.10.0
libtpu: 0.0.40
codegen_flags: <defaults>
</compile_context>

<pallas_src>
import functools

import jax
import jax.numpy as jnp
from jax.experimental import pallas as pl
from jax.experimental.pallas import tpu as pltpu


def _mlp_kernel(x_ref, w1_ref, b1_ref, w2_ref, b2_ref, w3_ref, b3_ref, o_ref):
    # f32 -> bf16 cast rides on the VPU; avoids a separate wrapper cast pass.
    x = x_ref[...].astype(jnp.bfloat16)
    # layer 1: relu(x @ W1 + b1)   (MXU bf16 in, f32 acc)
    h1 = jnp.dot(x, w1_ref[...], preferred_element_type=jnp.float32) + b1_ref[...]
    h1 = jnp.maximum(h1, 0.0).astype(jnp.bfloat16)
    # layer 2: relu(h1 @ W2 + b2)
    h2 = jnp.dot(h1, w2_ref[...], preferred_element_type=jnp.float32) + b2_ref[...]
    h2 = jnp.maximum(h2, 0.0).astype(jnp.bfloat16)
    # output layer: h2 @ W3 + b3 (no activation); store only out_dim columns.
    out = jnp.dot(h2, w3_ref[...], preferred_element_type=jnp.float32) + b3_ref[...]
    o_ref[...] = out.astype(o_ref.dtype)


def _round_up(v, m):
    return ((v + m - 1) // m) * m


def _ceil_div(a, b):
    return (a + b - 1) // b


def prepare_params(params, hidden_pad=128):
    """One-time prep: zero-pad hidden dim to lane width and cast weights to bf16.

    params: w1 [in,100], b1 [100], w2 [100,100], b2 [100], w3 [100,out], b3 [out]
            (weights transposed vs. PyTorch layout: [in_features, out_features]).
    """
    in_dim, hidden = params["w1"].shape
    out_dim = params["w3"].shape[1]
    H = _round_up(max(hidden, hidden_pad), 128)

    f32, bf16 = jnp.float32, jnp.bfloat16
    w1 = jnp.zeros((in_dim, H), bf16).at[:, :hidden].set(params["w1"].astype(bf16))
    w2 = jnp.zeros((H, H), bf16).at[:hidden, :hidden].set(params["w2"].astype(bf16))
    w3 = jnp.zeros((H, out_dim), bf16).at[:hidden, :].set(params["w3"].astype(bf16))
    b1 = jnp.zeros((1, H), f32).at[0, :hidden].set(params["b1"].astype(f32))
    b2 = jnp.zeros((1, H), f32).at[0, :hidden].set(params["b2"].astype(f32))
    b3 = params["b3"].astype(f32).reshape(1, out_dim)
    return {"w1": w1, "b1": b1, "w2": w2, "b2": b2, "w3": w3, "b3": b3}


@functools.partial(jax.jit, static_argnames=("tb",))
def network_forward(x, prepared, *, tb=None):
    """Forward pass of the 3-layer MLP as a single Pallas kernel.

    x:        [B, input_dim] float32
    prepared: output of prepare_params() (lane-padded, bf16 weights)
    Returns [B, out_dim] float32.
    """
    B, in_dim = x.shape
    H = prepared["w1"].shape[1]          # lane-aligned hidden width (128)
    out_dim = prepared["w3"].shape[1]

    # Batch tile: multiple of 8, capped at 4096. If more than one tile is
    # needed, force an even tile count so both v7x TensorCores get work.
    CAP = 4096
    if tb is None:
        if B <= CAP:
            tb = _round_up(B, 8)
        else:
            ntiles = _ceil_div(B, CAP)
            if ntiles % 2 == 1:
                ntiles += 1
            tb = _round_up(_ceil_div(B, ntiles), 8)
    tb = max(8, _round_up(tb, 8))
    ntiles = _ceil_div(B, tb)
    B_pad = ntiles * tb
    grid = (ntiles,)

    # Only materialize a padded copy of x when the batch actually needs it.
    if B_pad != B:
        x_in = jnp.zeros((B_pad, in_dim), jnp.float32).at[:B, :].set(x)
    else:
        x_in = x

    full = lambda i: (0, 0)  # weights / biases replicated across batch tiles

    flops = 2 * B_pad * (in_dim * H + H * H + H * out_dim)
    bytes_accessed = (
        B_pad * in_dim * 4                        # x (f32)
        + (in_dim * H + H * H + H * out_dim) * 2  # weights (bf16)
        + (2 * H + out_dim) * 4                   # biases (f32)
        + B_pad * out_dim * 4                     # output (f32, unpadded lanes)
    )

    out_pad = pl.pallas_call(
        _mlp_kernel,
        out_shape=jax.ShapeDtypeStruct((B_pad, out_dim), jnp.float32),
        grid_spec=pltpu.PrefetchScalarGridSpec(
            num_scalar_prefetch=0,
            grid=grid,
            in_specs=[
                pl.BlockSpec((tb, in_dim), lambda i: (i, 0)),  # x tile over batch
                pl.BlockSpec((in_dim, H), full),               # w1
                pl.BlockSpec((1, H), full),                    # b1
                pl.BlockSpec((H, H), full),                    # w2
                pl.BlockSpec((1, H), full),                    # b2
                pl.BlockSpec((H, out_dim), full),              # w3
                pl.BlockSpec((1, out_dim), full),              # b3
            ],
            out_specs=pl.BlockSpec((tb, out_dim), lambda i: (i, 0)),
        ),
        compiler_params=pltpu.CompilerParams(
            dimension_semantics=("parallel",),
            vmem_limit_bytes=48 * 1024 * 1024,
        ),
        cost_estimate=pl.CostEstimate(
            flops=flops, transcendentals=0, bytes_accessed=bytes_accessed
        ),
    )(x_in, prepared["w1"], prepared["b1"], prepared["w2"], prepared["b2"],
      prepared["w3"], prepared["b3"])

    return out_pad[:B] if B_pad != B else out_pad


def init_params(key, input_dim, output_dim, hidden=100):
    """Deterministic init mimicking torch.nn.Linear (uniform +/- 1/sqrt(fan_in)).

    Weights stored transposed ([in, out]) relative to PyTorch so the kernel
    computes x @ W directly.
    """
    ks = jax.random.split(key, 6)

    def linear(kw, kb, fan_in, fan_out):
        bound = 1.0 / jnp.sqrt(fan_in)
        w = jax.random.uniform(kw, (fan_in, fan_out), jnp.float32, -bound, bound)
        b = jax.random.uniform(kb, (fan_out,), jnp.float32, -bound, bound)
        return w, b

    w1, b1 = linear(ks[0], ks[1], input_dim, hidden)
    w2, b2 = linear(ks[2], ks[3], hidden, hidden)
    w3, b3 = linear(ks[4], ks[5], hidden, output_dim)
    return {"w1": w1, "b1": b1, "w2": w2, "b2": b2, "w3": w3, "b3": b3}


def _reference_forward_f32(x, p):
    h1 = jnp.maximum(x @ p["w1"] + p["b1"], 0.0)
    h2 = jnp.maximum(h1 @ p["w2"] + p["b2"], 0.0)
    return h2 @ p["w3"] + p["b3"]


def _reference_forward_bf16(x, p):
    # Mirrors the kernel's numerics: bf16 operands, f32 accumulation/bias/ReLU.
    # TODO(synk): bf16 MXU path deviates from the fp32 PyTorch reference at
    # ~1e-2 relative scale; switch operands to f32 if bit-faithfulness matters.
    bf16 = jnp.bfloat16
    xb = x.astype(bf16)
    h1 = jnp.maximum(
        jnp.dot(xb, p["w1"].astype(bf16), preferred_element_type=jnp.float32)
        + p["b1"], 0.0).astype(bf16)
    h2 = jnp.maximum(
        jnp.dot(h1, p["w2"].astype(bf16), preferred_element_type=jnp.float32)
        + p["b2"], 0.0).astype(bf16)
    return jnp.dot(h2, p["w3"].astype(bf16),
                   preferred_element_type=jnp.float32) + p["b3"]


if __name__ == "__main__":
    key = jax.random.PRNGKey(0)
    k_param, k_x = jax.random.split(key)

    batch = 8
    input_dim = 16
    output_dim = 4

    params = init_params(k_param, input_dim, output_dim)
    prepared = prepare_params(params)
    x = jax.random.normal(k_x, (batch, input_dim), jnp.float32)

    out = network_forward(x, prepared)
    out = jax.block_until_ready(out)
    assert out.shape == (batch, output_dim)

    # Tight check vs. a bf16-matched reference (same numerics as the kernel).
    ref_bf16 = _reference_forward_bf16(x, params)
    assert jnp.allclose(out, ref_bf16, atol=2e-3, rtol=2e-3), "mismatch vs. bf16 ref"

    # Loose check vs. the fp32 PyTorch-equivalent reference (bf16 quantization).
    ref_f32 = _reference_forward_f32(x, params)
    assert jnp.allclose(out, ref_f32, atol=5e-2, rtol=5e-2), "mismatch vs. fp32 ref"

    print("KERNEL_OK")
</pallas_src>

<mosaic_0001>
module attributes {stable_mosaic.version = 11 : i64} {
  func.func @_mlp_kernel(%arg0: i32, %arg1: memref<8x16xf32, #tpu.memory_space<vmem>>, %arg2: memref<16x128xbf16, #tpu.memory_space<vmem>>, %arg3: memref<1x128xf32, #tpu.memory_space<vmem>>, %arg4: memref<128x128xbf16, #tpu.memory_space<vmem>>, %arg5: memref<1x128xf32, #tpu.memory_space<vmem>>, %arg6: memref<128x4xbf16, #tpu.memory_space<vmem>>, %arg7: memref<1x4xf32, #tpu.memory_space<vmem>>, %arg8: memref<8x4xf32, #tpu.memory_space<vmem>>) attributes {dimension_semantics = [#tpu.dimension_semantics<parallel>], iteration_bounds = array<i64: 1>, scalar_prefetch = 0 : i64, scratch_operands = 0 : i64, tpu.core_type = #tpu.core_type<tc>, window_params = [{transform_indices = @transform_0, window_bounds = array<i64: 8, 16>}, {pipeline_mode = #tpu.pipeline_mode<synchronous>, transform_indices = @transform_1, window_bounds = array<i64: 16, 128>}, {pipeline_mode = #tpu.pipeline_mode<synchronous>, transform_indices = @transform_2, window_bounds = array<i64: 1, 128>}, {pipeline_mode = #tpu.pipeline_mode<synchronous>, transform_indices = @transform_3, window_bounds = array<i64: 128, 128>}, {pipeline_mode = #tpu.pipeline_mode<synchronous>, transform_indices = @transform_4, window_bounds = array<i64: 1, 128>}, {pipeline_mode = #tpu.pipeline_mode<synchronous>, transform_indices = @transform_5, window_bounds = array<i64: 128, 4>}, {pipeline_mode = #tpu.pipeline_mode<synchronous>, transform_indices = @transform_6, window_bounds = array<i64: 1, 4>}, {transform_indices = @transform_7, window_bounds = array<i64: 8, 4>}]} {
    %c0 = arith.constant 0 : index
    %c0_0 = arith.constant 0 : index
    %0 = vector.load %arg1[%c0, %c0_0] : memref<8x16xf32, #tpu.memory_space<vmem>>, vector<8x16xf32>
    %1 = arith.truncf %0 : vector<8x16xf32> to vector<8x16xbf16>
    %c0_1 = arith.constant 0 : index
    %c0_2 = arith.constant 0 : index
    %2 = vector.load %arg2[%c0_1, %c0_2] : memref<16x128xbf16, #tpu.memory_space<vmem>>, vector<16x128xbf16>
    %cst = arith.constant dense<0.000000e+00> : vector<8x128xf32>
    %3 = tpu.matmul %1, %2, %cst {dimension_numbers = #tpu.dot_dimension_numbers<[1], [0], [0], [1], [0, 0, 1, 1], [], []>} : vector<8x16xbf16>, vector<16x128xbf16>, vector<8x128xf32> -> vector<8x128xf32>
    %c0_3 = arith.constant 0 : index
    %c0_4 = arith.constant 0 : index
    %4 = vector.load %arg3[%c0_3, %c0_4] : memref<1x128xf32, #tpu.memory_space<vmem>>, vector<1x128xf32>
    %5 = vector.broadcast %4 : vector<1x128xf32> to vector<8x128xf32>
    %6 = arith.addf %3, %5 : vector<8x128xf32>
    %cst_5 = arith.constant 0.000000e+00 : f32
    %7 = vector.broadcast %cst_5 : f32 to vector<8x128xf32>
    %8 = arith.maximumf %6, %7 : vector<8x128xf32>
    %9 = arith.truncf %8 : vector<8x128xf32> to vector<8x128xbf16>
    %c0_6 = arith.constant 0 : index
    %c0_7 = arith.constant 0 : index
    %10 = vector.load %arg4[%c0_6, %c0_7] : memref<128x128xbf16, #tpu.memory_space<vmem>>, vector<128x128xbf16>
    %cst_8 = arith.constant dense<0.000000e+00> : vector<8x128xf32>
    %11 = tpu.matmul %9, %10, %cst_8 {dimension_numbers = #tpu.dot_dimension_numbers<[1], [0], [0], [1], [0, 0, 1, 1], [], []>} : vector<8x128xbf16>, vector<128x128xbf16>, vector<8x128xf32> -> vector<8x128xf32>
    %c0_9 = arith.constant 0 : index
    %c0_10 = arith.constant 0 : index
    %12 = vector.load %arg5[%c0_9, %c0_10] : memref<1x128xf32, #tpu.memory_space<vmem>>, vector<1x128xf32>
    %13 = vector.broadcast %12 : vector<1x128xf32> to vector<8x128xf32>
    %14 = arith.addf %11, %13 : vector<8x128xf32>
    %cst_11 = arith.constant 0.000000e+00 : f32
    %15 = vector.broadcast %cst_11 : f32 to vector<8x128xf32>
    %16 = arith.maximumf %14, %15 : vector<8x128xf32>
    %17 = arith.truncf %16 : vector<8x128xf32> to vector<8x128xbf16>
    %c0_12 = arith.constant 0 : index
    %c0_13 = arith.constant 0 : index
    %18 = vector.load %arg6[%c0_12, %c0_13] : memref<128x4xbf16, #tpu.memory_space<vmem>>, vector<128x4xbf16>
    %cst_14 = arith.constant dense<0.000000e+00> : vector<8x4xf32>
    %19 = tpu.matmul %17, %18, %cst_14 {dimension_numbers = #tpu.dot_dimension_numbers<[1], [0], [0], [1], [0, 0, 1, 1], [], []>} : vector<8x128xbf16>, vector<128x4xbf16>, vector<8x4xf32> -> vector<8x4xf32>
    %c0_15 = arith.constant 0 : index
    %c0_16 = arith.constant 0 : index
    %20 = vector.load %arg7[%c0_15, %c0_16] : memref<1x4xf32, #tpu.memory_space<vmem>>, vector<1x4xf32>
    %21 = vector.broadcast %20 : vector<1x4xf32> to vector<8x4xf32>
    %22 = arith.addf %19, %21 : vector<8x4xf32>
    %c0_17 = arith.constant 0 : index
    %c0_18 = arith.constant 0 : index
    %23 = vector.load %arg8[%c0_17, %c0_18] : memref<8x4xf32, #tpu.memory_space<vmem>>, vector<8x4xf32>
    tpu.vector_store %arg8[%c0_17, %c0_18], %22 {strides = array<i32>} : memref<8x4xf32, #tpu.memory_space<vmem>>, vector<8x4xf32>,
    return
  }
  func.func @transform_0(%arg0: i32) -> (i32, i32) {
    %c0_i32 = arith.constant 0 : i32
    %c0_i32_0 = arith.constant 0 : i32
    return %arg0, %c0_i32 : i32, i32
  }
  func.func @transform_1(%arg0: i32) -> (i32, i32) {
    %c0_i32 = arith.constant 0 : i32
    %c0_i32_0 = arith.constant 0 : i32
    %c0_i32_1 = arith.constant 0 : i32
    return %c0_i32, %c0_i32_0 : i32, i32
  }
  func.func @transform_2(%arg0: i32) -> (i32, i32) {
    %c0_i32 = arith.constant 0 : i32
    %c0_i32_0 = arith.constant 0 : i32
    %c0_i32_1 = arith.constant 0 : i32
    return %c0_i32, %c0_i32_0 : i32, i32
  }
  func.func @transform_3(%arg0: i32) -> (i32, i32) {
    %c0_i32 = arith.constant 0 : i32
    %c0_i32_0 = arith.constant 0 : i32
    %c0_i32_1 = arith.constant 0 : i32
    return %c0_i32, %c0_i32_0 : i32, i32
  }
  func.func @transform_4(%arg0: i32) -> (i32, i32) {
    %c0_i32 = arith.constant 0 : i32
    %c0_i32_0 = arith.constant 0 : i32
    %c0_i32_1 = arith.constant 0 : i32
    return %c0_i32, %c0_i32_0 : i32, i32
  }
  func.func @transform_5(%arg0: i32) -> (i32, i32) {
    %c0_i32 = arith.constant 0 : i32
    %c0_i32_0 = arith.constant 0 : i32
    %c0_i32_1 = arith.constant 0 : i32
    return %c0_i32, %c0_i32_0 : i32, i32
  }
  func.func @transform_6(%arg0: i32) -> (i32, i32) {
    %c0_i32 = arith.constant 0 : i32
    %c0_i32_0 = arith.constant 0 : i32
    %c0_i32_1 = arith.constant 0 : i32
    return %c0_i32, %c0_i32_0 : i32, i32
  }
  func.func @transform_7(%arg0: i32) -> (i32, i32) {
    %c0_i32 = arith.constant 0 : i32
    %c0_i32_0 = arith.constant 0 : i32
    return %arg0, %c0_i32 : i32, i32
  }
}

</mosaic_0001>

<llo_original>
// kernel: network_forward.1
$region0: #{network_forward.1}
  #allocation0 [shape = 'u32[]', space=smem, size = 0x4, offset = 0x4, fixed_abs, tag = 'smem constant byte address 0x4 - core index']
  #allocation1 [shape = 'u32[144,128]{1,0:T(1,128)}', space=vmem, size = 0x12000, scoped, tag = 'internal scratch']
  %s0 = inlined_call_operand.vmem [shape: f32[8,16], index: 0, kind: input, shape index: {}]
  %s1 = inlined_call_operand.hbm [shape: bf16[16,128], index: 1, kind: input, shape index: {}]
  %s2 = inlined_call_operand.vmem [shape: f32[1,128], index: 2, kind: input, shape index: {}]
  %s3 = inlined_call_operand.vmem [shape: bf16[128,128], index: 3, kind: input, shape index: {}]
  %s4 = inlined_call_operand.vmem [shape: f32[1,128], index: 4, kind: input, shape index: {}]
  %s5 = inlined_call_operand.vmem [shape: bf16[128,4], index: 5, kind: input, shape index: {}]
  %s6 = inlined_call_operand.hbm [shape: f32[1,4], index: 6, kind: input, shape index: {}]
  %s7 = inlined_call_operand.vmem [shape: f32[8,4], index: 7, kind: output, shape index: {}]
  %s8 = sld [smem:[#allocation0]]
  $region46: #{network_forward.1} parent=0
    _
  %s10 = ssub.s32 1, %s8
  %s11 = scalar_select 0, %s10, %s8
  $region1: #{network_forward.1} parent=0
    #allocation2 [shape = 'u8[4096]{0}', space=vmem, size = 0x1000, scoped, tag = 'input window, operand 1, single buffered']
    #allocation3 [shape = 's32[1]{0}', space=sflag, size = 0x4, scoped, tag = 'scoped memory for network_forward.1']
    #allocation4 [shape = 'u8[512]{0}', space=vmem, size = 0x400, scoped, tag = 'input window, operand 6, single buffered']
    #allocation5 [shape = 's32[1]{0}', space=sflag, size = 0x4, scoped, tag = 'scoped memory for network_forward.1']
    %12 = vsyncpa [#allocation3], 0
    %13 = vsyncpa [#allocation5], 0
    // Predicated region
    $region2: #{network_forward.1} parent=1 // pred_check
      _
    $region3: #{network_forward.1} parent=1 // pred_check_branch
      %15 = sbr.rel (0) target = $region5
    $region4: #{network_forward.1} parent=1 // pred_region
      _
    $region5: #{network_forward.1} parent=1 // pred_fallthru
      _
    // Predicated region
    $region6: #{network_forward.1} parent=1 // pred_check
      _
    $region7: #{network_forward.1} parent=1 // pred_check_branch
      %17 = sbr.rel (0) target = $region9
    $region8: #{network_forward.1} parent=1 // pred_region
      %s19 = ssub.s32 128, 128
      %20 = vsyncadd [#allocation3], %s19
      %s21 = sshll.u32 [#allocation2], 4
      %s22 = int_to_ptr.vmem [resolvable:$true] %s21
      %27 = dma.hbm_to_vmem [thread:$0]  %s1, 128, %s22, [#allocation3], 64, 64, 4
    $region9: #{network_forward.1} parent=1 // pred_fallthru
      _
    // Predicated region
    $region10: #{network_forward.1} parent=1 // pred_check
      _
    $region11: #{network_forward.1} parent=1 // pred_check_branch
      %29 = sbr.rel (0) target = $region13
    $region12: #{network_forward.1} parent=1 // pred_region
      _
    $region13: #{network_forward.1} parent=1 // pred_fallthru
      _
    // Predicated region
    $region14: #{network_forward.1} parent=1 // pred_check
      _
    $region15: #{network_forward.1} parent=1 // pred_check_branch
      %31 = sbr.rel (0) target = $region17
    $region16: #{network_forward.1} parent=1 // pred_region
      _
    $region17: #{network_forward.1} parent=1 // pred_fallthru
      _
    // Predicated region
    $region18: #{network_forward.1} parent=1 // pred_check
      _
    $region19: #{network_forward.1} parent=1 // pred_check_branch
      %33 = sbr.rel (0) target = $region21
    $region20: #{network_forward.1} parent=1 // pred_region
      _
    $region21: #{network_forward.1} parent=1 // pred_fallthru
      _
    // Predicated region
    $region22: #{network_forward.1} parent=1 // pred_check
      _
    $region23: #{network_forward.1} parent=1 // pred_check_branch
      %35 = sbr.rel (0) target = $region25
    $region24: #{network_forward.1} parent=1 // pred_region
      _
    $region25: #{network_forward.1} parent=1 // pred_fallthru
      _
    // Predicated region
    $region26: #{network_forward.1} parent=1 // pred_check
      _
    $region27: #{network_forward.1} parent=1 // pred_check_branch
      %37 = sbr.rel (0) target = $region29
    $region28: #{network_forward.1} parent=1 // pred_region
      %s39 = ssub.s32 16, 16
      %40 = vsyncadd [#allocation5], %s39
      %s42 = sshll.u32 [#allocation4], 4
      %s43 = int_to_ptr.vmem [resolvable:$true] %s42
      %45 = dma.hbm_to_vmem [thread:$0]  %s6, 16, %s43, [#allocation5]
    $region29: #{network_forward.1} parent=1 // pred_fallthru
      _
    // Predicated region
    $region30: #{network_forward.1} parent=1 // pred_check
      _
    $region31: #{network_forward.1} parent=1 // pred_check_branch
      %47 = sbr.rel (0) target = $region33
    $region32: #{network_forward.1} parent=1 // pred_region
      %48 = dma.done [#allocation3], 128
    $region33: #{network_forward.1} parent=1 // pred_fallthru
      _
    // Predicated region
    $region34: #{network_forward.1} parent=1 // pred_check
      _
    $region35: #{network_forward.1} parent=1 // pred_check_branch
      %50 = sbr.rel (0) target = $region37
    $region36: #{network_forward.1} parent=1 // pred_region
      %51 = dma.done [#allocation5], 16
    $region37: #{network_forward.1} parent=1 // pred_fallthru
      _
    %v53 = vld [vmem:[%s0] sm:$0xff]
    %v54 = vpack.c.bf16 %v53, %v53
    %v55 = vld [vmem:[#allocation2] sm:$0xf]
    %v56 = vld [vmem:[#allocation2 + $0x4] sm:$0xf]
    %v57 = vld [vmem:[%s2] sm:$0x1]
    %v59 = vlaneseq
    %v60 = vshrl.u32 %v59, 7
    %v61 = vsub.s32 0, %v60
    %v62 = vrot.slane %v57, %v61
    %v66 = vunpack.c.l.b16 %v55
    %v67 = vunpack.c.l.b16 %v56
    %v68 = vpack.c.b16 %v67, %v66
    %vm70 = vcmask 130048
    %v72 = vsel %vm70, %v54, 0
    %74 = vmatprep.subr.bf16.mxu0 0
    %75 = vmatpush1.bf16.msra.mxu0 0
    %76 = vmatprep.subr.bf16.mxu0 0
    %77 = vmatpush1.bf16.msra.mxu0 0
    %78 = vmatprep.subr.bf16.mxu0 0
    %79 = vmatpush1.bf16.msra.mxu0 0
    %80 = vmatprep.subr.bf16.mxu0 0
    %81 = vmatpush1.bf16.msra.mxu0 0
    %82 = vmatprep.subr.bf16.mxu0 0
    %83 = vmatpush1.bf16.msra.mxu0 0
    %84 = vmatprep.subr.bf16.mxu0 0
    %85 = vmatpush1.bf16.msra.mxu0 0
    %86 = vmatprep.subr.bf16.mxu0 0
    %87 = vmatpush1.bf16.msra.mxu0 0
    %88 = vmatprep.subr.bf16.mxu0 0
    %89 = vmatpush1.bf16.msra.mxu0 %v68
    %90 = vmatprep.subr.bf16.mxu0 0
    %91 = vmatpush2.bf16.msra.mxu0 0
    %92 = vmatprep.subr.bf16.mxu0 0
    %93 = vmatpush2.bf16.msra.mxu0 0
    %94 = vmatprep.subr.bf16.mxu0 0
    %95 = vmatpush2.bf16.msra.mxu0 0
    %96 = vmatprep.subr.bf16.mxu0 0
    %97 = vmatpush2.bf16.msra.mxu0 0
    %98 = vmatprep.subr.bf16.mxu0 0
    %99 = vmatpush2.bf16.msra.mxu0 0
    %100 = vmatprep.subr.bf16.mxu0 0
    %101 = vmatpush2.bf16.msra.mxu0 0
    %102 = vmatprep.subr.bf16.mxu0 0
    %103 = vmatpush2.bf16.msra.mxu0 0
    %104 = vmatprep.subr.bf16.mxu0 0
    %105 = vmatpush2.bf16.msra.mxu0 0
    %106 = vmatprep.mubr.bf16.mxu0 0
    %107 = vmatmul.mubr.bf16.gmra.mxu0 %v72
    %v108 = vpop.f32.mrf.mxu0
    %v109 = vadd.f32 %v62, %v108
    %v110 = vpop.f32.mrf.mxu0
    %v111 = vpop.f32.mrf.mxu0
    %v112 = vpop.f32.mrf.mxu0
    %113 = vdwg.mxu0
    %v114 = vmax.f32 %v109, 0.0
    %v115 = vpack.c.bf16 %v114, %v114
    %v116 = vld [vmem:[%s3] sm:$0xf]
    %v117 = vld [vmem:[%s3 + $0x4] sm:$0xf]
    %v118 = vld [vmem:[%s3 + $0x8] sm:$0xf]
    %v119 = vld [vmem:[%s3 + $0xc] sm:$0xf]
    %v120 = vld [vmem:[%s3 + $0x10] sm:$0xf]
    %v121 = vld [vmem:[%s3 + $0x14] sm:$0xf]
    %v122 = vld [vmem:[%s3 + $0x18] sm:$0xf]
    %v123 = vld [vmem:[%s3 + $0x1c] sm:$0xf]
    %v124 = vld [vmem:[%s3 + $0x20] sm:$0xf]
    %v125 = vld [vmem:[%s3 + $0x24] sm:$0xf]
    %v126 = vld [vmem:[%s3 + $0x28] sm:$0xf]
    %v127 = vld [vmem:[%s3 + $0x2c] sm:$0xf]
    %v128 = vld [vmem:[%s3 + $0x30] sm:$0xf]
    %v129 = vld [vmem:[%s3 + $0x34] sm:$0xf]
    %v130 = vld [vmem:[%s3 + $0x38] sm:$0xf]
    %v131 = vld [vmem:[%s3 + $0x3c] sm:$0xf]
    %v132 = vld [vmem:[%s4] sm:$0x1]
    %v134 = vlaneseq
    %v135 = vshrl.u32 %v134, 7
    %v136 = vsub.s32 0, %v135
    %v137 = vrot.slane %v132, %v136
    %v155 = vunpack.c.l.b16 %v116
    %v156 = vunpack.c.l.b16 %v117
    %v157 = vunpack.c.l.b16 %v118
    %v158 = vunpack.c.l.b16 %v119
    %v159 = vunpack.c.l.b16 %v120
    %v160 = vunpack.c.l.b16 %v121
    %v161 = vunpack.c.l.b16 %v122
    %v162 = vunpack.c.l.b16 %v123
    %v163 = vunpack.c.l.b16 %v124
    %v164 = vunpack.c.l.b16 %v125
    %v165 = vunpack.c.l.b16 %v126
    %v166 = vunpack.c.l.b16 %v127
    %v167 = vunpack.c.l.b16 %v128
    %v168 = vunpack.c.l.b16 %v129
    %v169 = vunpack.c.l.b16 %v130
    %v170 = vunpack.c.l.b16 %v131
    %v171 = vpack.c.b16 %v156, %v155
    %v172 = vpack.c.b16 %v158, %v157
    %v173 = vpack.c.b16 %v160, %v159
    %v174 = vpack.c.b16 %v162, %v161
    %v175 = vpack.c.b16 %v164, %v163
    %v176 = vpack.c.b16 %v166, %v165
    %v177 = vpack.c.b16 %v168, %v167
    %v178 = vpack.c.b16 %v170, %v169
    %187 = vmatprep.subr.bf16.mxu0 0
    %188 = vmatpush1.bf16.msra.mxu0 %v178
    %189 = vmatprep.subr.bf16.mxu0 0
    %190 = vmatpush1.bf16.msra.mxu0 %v177
    %191 = vmatprep.subr.bf16.mxu0 0
    %192 = vmatpush1.bf16.msra.mxu0 %v176
    %193 = vmatprep.subr.bf16.mxu0 0
    %194 = vmatpush1.bf16.msra.mxu0 %v175
    %195 = vmatprep.subr.bf16.mxu0 0
    %196 = vmatpush1.bf16.msra.mxu0 %v174
    %197 = vmatprep.subr.bf16.mxu0 0
    %198 = vmatpush1.bf16.msra.mxu0 %v173
    %199 = vmatprep.subr.bf16.mxu0 0
    %200 = vmatpush1.bf16.msra.mxu0 %v172
    %201 = vmatprep.subr.bf16.mxu0 0
    %202 = vmatpush1.bf16.msra.mxu0 %v171
    %203 = vmatprep.subr.bf16.mxu0 0
    %204 = vmatpush2.bf16.msra.mxu0 0
    %205 = vmatprep.subr.bf16.mxu0 0
    %206 = vmatpush2.bf16.msra.mxu0 0
    %207 = vmatprep.subr.bf16.mxu0 0
    %208 = vmatpush2.bf16.msra.mxu0 0
    %209 = vmatprep.subr.bf16.mxu0 0
    %210 = vmatpush2.bf16.msra.mxu0 0
    %211 = vmatprep.subr.bf16.mxu0 0
    %212 = vmatpush2.bf16.msra.mxu0 0
    %213 = vmatprep.subr.bf16.mxu0 0
    %214 = vmatpush2.bf16.msra.mxu0 0
    %215 = vmatprep.subr.bf16.mxu0 0
    %216 = vmatpush2.bf16.msra.mxu0 0
    %217 = vmatprep.subr.bf16.mxu0 0
    %218 = vmatpush2.bf16.msra.mxu0 0
    %219 = vmatprep.mubr.bf16.mxu0 0
    %220 = vmatmul.mubr.bf16.gmra.mxu0 %v115
    %v221 = vpop.f32.mrf.mxu0
    %v222 = vadd.f32 %v137, %v221
    %v223 = vpop.f32.mrf.mxu0
    %v224 = vpop.f32.mrf.mxu0
    %v225 = vpop.f32.mrf.mxu0
    %226 = vdwg.mxu0
    %v227 = vmax.f32 %v222, 0.0
    %v228 = vpack.c.bf16 %v227, %v227
    %v229 = vld [vmem:[%s5] sm:$0xf]
    %v230 = vld [vmem:[%s5 + $0x4] sm:$0xf]
    %v231 = vld [vmem:[%s5 + $0x8] sm:$0xf]
    %v232 = vld [vmem:[%s5 + $0xc] sm:$0xf]
    %v233 = vld [vmem:[%s5 + $0x10] sm:$0xf]
    %v234 = vld [vmem:[%s5 + $0x14] sm:$0xf]
    %v235 = vld [vmem:[%s5 + $0x18] sm:$0xf]
    %v236 = vld [vmem:[%s5 + $0x1c] sm:$0xf]
    %v237 = vld [vmem:[%s5 + $0x20] sm:$0xf]
    %v238 = vld [vmem:[%s5 + $0x24] sm:$0xf]
    %v239 = vld [vmem:[%s5 + $0x28] sm:$0xf]
    %v240 = vld [vmem:[%s5 + $0x2c] sm:$0xf]
    %v241 = vld [vmem:[%s5 + $0x30] sm:$0xf]
    %v242 = vld [vmem:[%s5 + $0x34] sm:$0xf]
    %v243 = vld [vmem:[%s5 + $0x38] sm:$0xf]
    %v244 = vld [vmem:[%s5 + $0x3c] sm:$0xf]
    %v245 = vld [vmem:[#allocation4] sm:$0x1]
    %v247 = vlaneseq
    %v248 = vshrl.u32 %v247, 7
    %v249 = vsub.s32 0, %v248
    %v250 = vrot.slane %v245, %v249
    %v268 = vunpack.c.l.b16 %v229
    %v269 = vunpack.c.l.b16 %v230
    %v270 = vunpack.c.l.b16 %v231
    %v271 = vunpack.c.l.b16 %v232
    %v272 = vunpack.c.l.b16 %v233
    %v273 = vunpack.c.l.b16 %v234
    %v274 = vunpack.c.l.b16 %v235
    %v275 = vunpack.c.l.b16 %v236
    %v276 = vunpack.c.l.b16 %v237
    %v277 = vunpack.c.l.b16 %v238
    %v278 = vunpack.c.l.b16 %v239
    %v279 = vunpack.c.l.b16 %v240
    %v280 = vunpack.c.l.b16 %v241
    %v281 = vunpack.c.l.b16 %v242
    %v282 = vunpack.c.l.b16 %v243
    %v283 = vunpack.c.l.b16 %v244
    %v284 = vpack.c.b16 %v269, %v268
    %v285 = vpack.c.b16 %v271, %v270
    %v286 = vpack.c.b16 %v273, %v272
    %v287 = vpack.c.b16 %v275, %v274
    %v288 = vpack.c.b16 %v277, %v276
    %v289 = vpack.c.b16 %v279, %v278
    %v290 = vpack.c.b16 %v281, %v280
    %v291 = vpack.c.b16 %v283, %v282
    %300 = vmatprep.subr.bf16.mxu0 0
    %301 = vmatpush1.bf16.msra.mxu0 %v291
    %302 = vmatprep.subr.bf16.mxu0 0
    %303 = vmatpush1.bf16.msra.mxu0 %v290
    %304 = vmatprep.subr.bf16.mxu0 0
    %305 = vmatpush1.bf16.msra.mxu0 %v289
    %306 = vmatprep.subr.bf16.mxu0 0
    %307 = vmatpush1.bf16.msra.mxu0 %v288
    %308 = vmatprep.subr.bf16.mxu0 0
    %309 = vmatpush1.bf16.msra.mxu0 %v287
    %310 = vmatprep.subr.bf16.mxu0 0
    %311 = vmatpush1.bf16.msra.mxu0 %v286
    %312 = vmatprep.subr.bf16.mxu0 0
    %313 = vmatpush1.bf16.msra.mxu0 %v285
    %314 = vmatprep.subr.bf16.mxu0 0
    %315 = vmatpush1.bf16.msra.mxu0 %v284
    %316 = vmatprep.subr.bf16.mxu0 0
    %317 = vmatpush2.bf16.msra.mxu0 0
    %318 = vmatprep.subr.bf16.mxu0 0
    %319 = vmatpush2.bf16.msra.mxu0 0
    %320 = vmatprep.subr.bf16.mxu0 0
    %321 = vmatpush2.bf16.msra.mxu0 0
    %322 = vmatprep.subr.bf16.mxu0 0
    %323 = vmatpush2.bf16.msra.mxu0 0
    %324 = vmatprep.subr.bf16.mxu0 0
    %325 = vmatpush2.bf16.msra.mxu0 0
    %326 = vmatprep.subr.bf16.mxu0 0
    %327 = vmatpush2.bf16.msra.mxu0 0
    %328 = vmatprep.subr.bf16.mxu0 0
    %329 = vmatpush2.bf16.msra.mxu0 0
    %330 = vmatprep.subr.bf16.mxu0 0
    %331 = vmatpush2.bf16.msra.mxu0 0
    %332 = vmatprep.mubr.bf16.mxu0 0
    %333 = vmatmul.mubr.bf16.gmra.mxu0 %v228
    %v334 = vpop.f32.mrf.mxu0
    %v335 = vadd.f32 %v250, %v334
    %v336 = vpop.f32.mrf.mxu0
    %v337 = vpop.f32.mrf.mxu0
    %v338 = vpop.f32.mrf.mxu0
    %339 = vdwg.mxu0
    %vm340 = vcmask 31744
    %341 = vst.msk [vmem:[%s7] sm:$0xff] %vm340, %v335
    // Predicated region
    $region38: #{network_forward.1} parent=1 // pred_check
      _
    $region39: #{network_forward.1} parent=1 // pred_check_branch
      %343 = sbr.rel (0) target = $region41
    $region40: #{network_forward.1} parent=1 // pred_region
      _
    $region41: #{network_forward.1} parent=1 // pred_fallthru
      _
    // Predicated region
    $region42: #{network_forward.1} parent=1 // pred_check
      _
    $region43: #{network_forward.1} parent=1 // pred_check_branch
      %345 = sbr.rel (0) target = $region45
    $region44: #{network_forward.1} parent=1 // pred_region
      _
    $region45: #{network_forward.1} parent=1 // pred_fallthru
      _
    %346 = vsyncpa [#allocation3], 1
    %347 = vsyncpa [#allocation5], 1

</llo_original>
